<compile_context>
chip_gen: v5e
topology: v5e:2x2
jax: 0.10.0
libtpu: 0.0.40
codegen_flags: <defaults>
</compile_context>

<pallas_src>
import numpy as np
import jax
import jax.numpy as jnp
from jax.experimental import pallas as pl
from jax.experimental.pallas import tpu as pltpu


# ----------------------------------------------------------------------------
# Replicate the layer-size logic from EncoderModule.__init__ (host side, numpy)
# ----------------------------------------------------------------------------
def encoder_layer_dims(n_features: int, sequence_length: int, hidden_size: int):
    input_length = n_features * sequence_length
    dec_steps = 2.0 ** np.arange(
        max(np.ceil(np.log2(hidden_size)), 2), np.log2(input_length)
    )[1:]
    dec_setup = np.concatenate([[hidden_size], dec_steps.repeat(2), [input_length]])
    enc_setup = dec_setup[::-1]
    pairs = enc_setup.reshape(-1, 2)
    # Each pair -> Linear(a, b) followed by Tanh; the trailing Tanh is dropped.
    return [(int(a), int(b)) for a, b in pairs]


def _round_up(x: int, m: int) -> int:
    return ((x + m - 1) // m) * m


def _tpu_vmem_capacity_bytes() -> int:
    """Generation-aware physical VMEM size (64 MiB on v7x, 128 MiB on v5e/v6e)."""
    try:
        return int(pltpu.get_tpu_info().vmem_capacity_bytes)
    except Exception:
        kind = jax.devices()[0].device_kind.lower()
        if "7" in kind:  # TPU7x / v7x
            return 64 * 1024 * 1024
        return 128 * 1024 * 1024


def _use_bf16_tanh() -> bool:
    """bf16 bias+tanh on v6e/v7x (bf16 VPU/EUP); keep f32 on v5e and older."""
    kind = jax.devices()[0].device_kind.lower()
    return "v5" not in kind


def _resident_spec(shape, single_buffer: bool):
    """BlockSpec for a grid-invariant (VMEM-resident) operand."""
    if single_buffer:
        try:
            # Constant index_map => no re-fetch; Buffered(1) drops the pointless
            # second buffer, freeing VMEM for larger batch tiles.
            return pl.BlockSpec(shape, lambda gi: (0, 0), pipeline_mode=pl.Buffered(1))
        except TypeError:
            pass
    return pl.BlockSpec(shape, lambda gi: (0, 0))


# ----------------------------------------------------------------------------
# Pallas kernel: full MLP forward (bf16 matmuls, f32 accum) in VMEM
# ----------------------------------------------------------------------------
def _make_mlp_kernel(n_layers: int, tanh_bf16: bool):
    def kernel(*refs):
        # refs = (x_ref, w_0..w_{L-1}, b_0..b_{L-1}, out_ref)
        x_ref = refs[0]
        w_refs = refs[1 : 1 + n_layers]
        b_refs = refs[1 + n_layers : 1 + 2 * n_layers]
        out_ref = refs[1 + 2 * n_layers]

        h = x_ref[...]  # bf16 activation tile (TB, din_p)
        for i in range(n_layers):
            # MXU: bf16 x bf16 -> f32 accumulation
            acc = jnp.dot(h, w_refs[i][...], preferred_element_type=jnp.float32)
            if i < n_layers - 1:
                if tanh_bf16:
                    # v6e/v7x: bias + tanh in bf16 (halves EUP work & vreg pressure)
                    hb = acc.astype(jnp.bfloat16) + b_refs[i][...].astype(jnp.bfloat16)
                    h = jnp.tanh(hb)
                else:
                    # v5e: no bf16 VPU/EUP -> keep nonlinearity in f32
                    h = jnp.tanh(acc + b_refs[i][...]).astype(jnp.bfloat16)
            else:
                h = acc + b_refs[i][...]  # final Tanh was dropped in the module
        out_ref[...] = h.astype(out_ref.dtype)

    return kernel


# ----------------------------------------------------------------------------
# Wrapper: padding, batch tiling, pallas_call
# ----------------------------------------------------------------------------
def encoder_forward(ts_batch, weights, biases, *, tb_max: int = 1024):
    """Pallas implementation of EncoderModule.forward.

    ts_batch: (B, seq, feat) array.
    weights:  list of (in_dim, out_dim) float32 arrays (Linear weight, pre-transposed).
    biases:   list of (out_dim,) or (1, out_dim) float32 arrays.
    Returns (B, out_dim) float32.
    """
    B = int(ts_batch.shape[0])
    x = jnp.reshape(ts_batch, (B, -1)).astype(jnp.float32)  # torch .view(B,-1).float()
    din = int(x.shape[1])
    n_layers = len(weights)

    dims_in = [int(w.shape[0]) for w in weights]
    dims_out = [int(w.shape[1]) for w in weights]

    # Lane-dense padding of every layer width to a multiple of 128.
    din_p = _round_up(din, 128)
    outs_p = [_round_up(d, 128) for d in dims_out]
    ins_p = [din_p] + outs_p[:-1]

    # Zero-pad weights (bf16) and biases (f32). Padded rows/cols stay exactly 0
    # through the whole chain (tanh(0)=0), so results are unchanged.
    w_pad, b_pad = [], []
    for i in range(n_layers):
        w = weights[i].astype(jnp.bfloat16)
        pr, pc = ins_p[i] - dims_in[i], outs_p[i] - dims_out[i]
        if pr or pc:
            w = jnp.pad(w, ((0, pr), (0, pc)))
        w_pad.append(w)
        b = jnp.reshape(biases[i], (1, -1)).astype(jnp.float32)
        if pc:
            b = jnp.pad(b, ((0, 0), (0, pc)))
        b_pad.append(b)

    # ------------------------------------------------------------------
    # Generation-aware VMEM budget and batch-tile selection
    # ------------------------------------------------------------------
    vmem_cap = _tpu_vmem_capacity_bytes()
    budget = int(vmem_cap * 0.70)  # headroom for compiler internals
    tanh_bf16 = _use_bf16_tanh()

    max_dim = max([din_p] + outs_p)
    # Resident operands: bf16 weights + f32 biases (x2 in the fit-check below in
    # case the single-buffer request is not honored).
    resident_bytes = sum(ins_p[i] * outs_p[i] * 2 + outs_p[i] * 4 for i in range(n_layers))
    out_elem_bytes = 2  # bf16 output
    per_row_bytes = (
        2 * din_p * 2                      # x tile (bf16), double-buffered
        + 2 * outs_p[-1] * out_elem_bytes  # out tile (bf16), double-buffered
        + 8 * max_dim                      # f32 acc + bf16 intermediates (generous)
    )
    if 2 * resident_bytes + 8 * per_row_bytes > budget:
        # TODO(synk): for very large input_length, K-tile the first-layer matmul
        # (reduction grid axis + f32 VMEM accumulator) instead of keeping the full
        # first weight resident; not needed at these sizes.
        raise ValueError("encoder weights too large for the resident-VMEM strategy")

    tb_cap = max(8, ((budget - 2 * resident_bytes) // per_row_bytes) // 8 * 8)
    tb_max = int(min(tb_max, tb_cap))

    # Balanced tiles: minimize batch padding instead of round_up(B, TB).
    n_tiles = max(1, -(-B // tb_max))
    if n_tiles == 1 and B > 8:
        n_tiles = 2  # >=2 grid steps so v7x's second TensorCore gets work
    TB = max(8, _round_up(-(-B // n_tiles), 8))
    B_p = TB * n_tiles

    # Input: cast to bf16 FIRST, then pad (no extra padded-f32 HBM pass).
    x_bf = x.astype(jnp.bfloat16)
    if B_p != B or din_p != din:
        x_bf = jnp.pad(x_bf, ((0, B_p - B), (0, din_p - din)))

    grid = (B_p // TB,)
    kernel = _make_mlp_kernel(n_layers, tanh_bf16)
    out_spec = pl.BlockSpec((TB, outs_p[-1]), lambda gi: (gi, 0))
    vmem_limit = int(min(vmem_cap - (4 << 20), budget + (8 << 20)))

    def _run(single_buffer_resident: bool):
        in_specs = [pl.BlockSpec((TB, din_p), lambda gi: (gi, 0))]
        for i in range(n_layers):  # weights: resident across all grid steps
            in_specs.append(_resident_spec((ins_p[i], outs_p[i]), single_buffer_resident))
        for i in range(n_layers):  # biases: resident across all grid steps
            in_specs.append(_resident_spec((1, outs_p[i]), single_buffer_resident))
        out = pl.pallas_call(
            kernel,
            out_shape=jax.ShapeDtypeStruct((B_p, outs_p[-1]), jnp.bfloat16),
            grid=grid,
            in_specs=in_specs,
            out_specs=out_spec,
            compiler_params=pltpu.CompilerParams(
                dimension_semantics=("parallel",),  # megacore: independent batch tiles
                vmem_limit_bytes=vmem_limit,
            ),
        )(x_bf, *w_pad, *b_pad)
        return jax.block_until_ready(out)

    try:
        out_p = _run(True)
    except Exception:
        # Fallback: this Pallas/Mosaic version rejected single-buffered residents.
        out_p = _run(False)

    return out_p[:B, : dims_out[-1]].astype(jnp.float32)


# ----------------------------------------------------------------------------
# Plain-JAX reference (same bf16-operand / f32-accum math as the kernel)
# ----------------------------------------------------------------------------
def encoder_reference(ts_batch, weights, biases, tanh_bf16):
    B = ts_batch.shape[0]
    h = jnp.reshape(ts_batch, (B, -1)).astype(jnp.float32).astype(jnp.bfloat16)
    n_layers = len(weights)
    for i in range(n_layers):
        acc = jnp.dot(h, weights[i].astype(jnp.bfloat16),
                      preferred_element_type=jnp.float32)
        b = jnp.reshape(biases[i], (1, -1)).astype(jnp.float32)
        if i < n_layers - 1:
            if tanh_bf16:
                h = jnp.tanh(acc.astype(jnp.bfloat16) + b.astype(jnp.bfloat16))
            else:
                h = jnp.tanh(acc + b).astype(jnp.bfloat16)
        else:
            h = acc + b
    return h  # f32


if __name__ == "__main__":
    # Small shapes consistent with the module:
    batch = 2
    n_features = 8
    sequence_length = 16
    hidden_size = 8
    # -> input_length = 128; layer dims: 128->64, 64->32, 32->16, 16->8
    #    (Tanh between layers, none at the end)

    dims = encoder_layer_dims(n_features, sequence_length, hidden_size)

    key = jax.random.PRNGKey(0)
    keys = jax.random.split(key, 1 + 2 * len(dims))

    ts_batch = jax.random.normal(
        keys[0], (batch, sequence_length, n_features), dtype=jnp.float32
    )

    weights, biases = [], []
    for i, (a, b) in enumerate(dims):
        # Deterministic synthetic init (uniform, torch-Linear-like scale); stored as (in, out).
        bound = 1.0 / np.sqrt(a)
        w = jax.random.uniform(keys[1 + 2 * i], (a, b), jnp.float32, -bound, bound)
        bvec = jax.random.uniform(keys[2 + 2 * i], (b,), jnp.float32, -bound, bound)
        weights.append(w)
        biases.append(bvec)

    out = encoder_forward(ts_batch, weights, biases)
    out = jax.block_until_ready(out)

    ref = encoder_reference(ts_batch, weights, biases, _use_bf16_tanh())
    np.testing.assert_allclose(np.asarray(out), np.asarray(ref), rtol=1e-2, atol=1e-2)

    assert out.shape == (batch, hidden_size)
    print("KERNEL_OK")
</pallas_src>

<mosaic_0001>
module attributes {stable_mosaic.version = 11 : i64} {
  func.func @kernel(%arg0: i32, %arg1: memref<8x128xbf16, #tpu.memory_space<vmem>>, %arg2: memref<128x128xbf16, #tpu.memory_space<vmem>>, %arg3: memref<128x128xbf16, #tpu.memory_space<vmem>>, %arg4: memref<128x128xbf16, #tpu.memory_space<vmem>>, %arg5: memref<128x128xbf16, #tpu.memory_space<vmem>>, %arg6: memref<1x128xf32, #tpu.memory_space<vmem>>, %arg7: memref<1x128xf32, #tpu.memory_space<vmem>>, %arg8: memref<1x128xf32, #tpu.memory_space<vmem>>, %arg9: memref<1x128xf32, #tpu.memory_space<vmem>>, %arg10: memref<8x128xbf16, #tpu.memory_space<vmem>>) attributes {dimension_semantics = [#tpu.dimension_semantics<parallel>], iteration_bounds = array<i64: 1>, scalar_prefetch = 0 : i64, scratch_operands = 0 : i64, tpu.core_type = #tpu.core_type<tc>, window_params = [{transform_indices = @transform_0, window_bounds = array<i64: 8, 128>}, {pipeline_mode = #tpu.pipeline_mode<synchronous>, transform_indices = @transform_1, window_bounds = array<i64: 128, 128>}, {pipeline_mode = #tpu.pipeline_mode<synchronous>, transform_indices = @transform_2, window_bounds = array<i64: 128, 128>}, {pipeline_mode = #tpu.pipeline_mode<synchronous>, transform_indices = @transform_3, window_bounds = array<i64: 128, 128>}, {pipeline_mode = #tpu.pipeline_mode<synchronous>, transform_indices = @transform_4, window_bounds = array<i64: 128, 128>}, {pipeline_mode = #tpu.pipeline_mode<synchronous>, transform_indices = @transform_5, window_bounds = array<i64: 1, 128>}, {pipeline_mode = #tpu.pipeline_mode<synchronous>, transform_indices = @transform_6, window_bounds = array<i64: 1, 128>}, {pipeline_mode = #tpu.pipeline_mode<synchronous>, transform_indices = @transform_7, window_bounds = array<i64: 1, 128>}, {pipeline_mode = #tpu.pipeline_mode<synchronous>, transform_indices = @transform_8, window_bounds = array<i64: 1, 128>}, {transform_indices = @transform_9, window_bounds = array<i64: 8, 128>}]} {
    %c0 = arith.constant 0 : index
    %c0_0 = arith.constant 0 : index
    %0 = vector.load %arg1[%c0, %c0_0] : memref<8x128xbf16, #tpu.memory_space<vmem>>, vector<8x128xbf16>
    %c0_1 = arith.constant 0 : index
    %c0_2 = arith.constant 0 : index
    %1 = vector.load %arg2[%c0_1, %c0_2] : memref<128x128xbf16, #tpu.memory_space<vmem>>, vector<128x128xbf16>
    %cst = arith.constant dense<0.000000e+00> : vector<8x128xf32>
    %2 = tpu.matmul %0, %1, %cst {dimension_numbers = #tpu.dot_dimension_numbers<[1], [0], [0], [1], [0, 0, 1, 1], [], []>} : vector<8x128xbf16>, vector<128x128xbf16>, vector<8x128xf32> -> vector<8x128xf32>
    %3 = arith.truncf %2 : vector<8x128xf32> to vector<8x128xbf16>
    %c0_3 = arith.constant 0 : index
    %c0_4 = arith.constant 0 : index
    %4 = vector.load %arg6[%c0_3, %c0_4] : memref<1x128xf32, #tpu.memory_space<vmem>>, vector<1x128xf32>
    %5 = arith.truncf %4 : vector<1x128xf32> to vector<1x128xbf16>
    %6 = vector.broadcast %5 : vector<1x128xbf16> to vector<8x128xbf16>
    %7 = arith.addf %3, %6 : vector<8x128xbf16>
    %8 = math.tanh %7 : vector<8x128xbf16>
    %c0_5 = arith.constant 0 : index
    %c0_6 = arith.constant 0 : index
    %9 = vector.load %arg3[%c0_5, %c0_6] : memref<128x128xbf16, #tpu.memory_space<vmem>>, vector<128x128xbf16>
    %cst_7 = arith.constant dense<0.000000e+00> : vector<8x128xf32>
    %10 = tpu.matmul %8, %9, %cst_7 {dimension_numbers = #tpu.dot_dimension_numbers<[1], [0], [0], [1], [0, 0, 1, 1], [], []>} : vector<8x128xbf16>, vector<128x128xbf16>, vector<8x128xf32> -> vector<8x128xf32>
    %11 = arith.truncf %10 : vector<8x128xf32> to vector<8x128xbf16>
    %c0_8 = arith.constant 0 : index
    %c0_9 = arith.constant 0 : index
    %12 = vector.load %arg7[%c0_8, %c0_9] : memref<1x128xf32, #tpu.memory_space<vmem>>, vector<1x128xf32>
    %13 = arith.truncf %12 : vector<1x128xf32> to vector<1x128xbf16>
    %14 = vector.broadcast %13 : vector<1x128xbf16> to vector<8x128xbf16>
    %15 = arith.addf %11, %14 : vector<8x128xbf16>
    %16 = math.tanh %15 : vector<8x128xbf16>
    %c0_10 = arith.constant 0 : index
    %c0_11 = arith.constant 0 : index
    %17 = vector.load %arg4[%c0_10, %c0_11] : memref<128x128xbf16, #tpu.memory_space<vmem>>, vector<128x128xbf16>
    %cst_12 = arith.constant dense<0.000000e+00> : vector<8x128xf32>
    %18 = tpu.matmul %16, %17, %cst_12 {dimension_numbers = #tpu.dot_dimension_numbers<[1], [0], [0], [1], [0, 0, 1, 1], [], []>} : vector<8x128xbf16>, vector<128x128xbf16>, vector<8x128xf32> -> vector<8x128xf32>
    %19 = arith.truncf %18 : vector<8x128xf32> to vector<8x128xbf16>
    %c0_13 = arith.constant 0 : index
    %c0_14 = arith.constant 0 : index
    %20 = vector.load %arg8[%c0_13, %c0_14] : memref<1x128xf32, #tpu.memory_space<vmem>>, vector<1x128xf32>
    %21 = arith.truncf %20 : vector<1x128xf32> to vector<1x128xbf16>
    %22 = vector.broadcast %21 : vector<1x128xbf16> to vector<8x128xbf16>
    %23 = arith.addf %19, %22 : vector<8x128xbf16>
    %24 = math.tanh %23 : vector<8x128xbf16>
    %c0_15 = arith.constant 0 : index
    %c0_16 = arith.constant 0 : index
    %25 = vector.load %arg5[%c0_15, %c0_16] : memref<128x128xbf16, #tpu.memory_space<vmem>>, vector<128x128xbf16>
    %cst_17 = arith.constant dense<0.000000e+00> : vector<8x128xf32>
    %26 = tpu.matmul %24, %25, %cst_17 {dimension_numbers = #tpu.dot_dimension_numbers<[1], [0], [0], [1], [0, 0, 1, 1], [], []>} : vector<8x128xbf16>, vector<128x128xbf16>, vector<8x128xf32> -> vector<8x128xf32>
    %c0_18 = arith.constant 0 : index
    %c0_19 = arith.constant 0 : index
    %27 = vector.load %arg9[%c0_18, %c0_19] : memref<1x128xf32, #tpu.memory_space<vmem>>, vector<1x128xf32>
    %28 = vector.broadcast %27 : vector<1x128xf32> to vector<8x128xf32>
    %29 = arith.addf %26, %28 : vector<8x128xf32>
    %30 = arith.truncf %29 : vector<8x128xf32> to vector<8x128xbf16>
    %c0_20 = arith.constant 0 : index
    %c0_21 = arith.constant 0 : index
    %31 = vector.load %arg10[%c0_20, %c0_21] : memref<8x128xbf16, #tpu.memory_space<vmem>>, vector<8x128xbf16>
    tpu.vector_store %arg10[%c0_20, %c0_21], %30 {strides = array<i32>} : memref<8x128xbf16, #tpu.memory_space<vmem>>, vector<8x128xbf16>,
    return
  }
  func.func @transform_0(%arg0: i32) -> (i32, i32) {
    %c0_i32 = arith.constant 0 : i32
    %c0_i32_0 = arith.constant 0 : i32
    return %arg0, %c0_i32 : i32, i32
  }
  func.func @transform_1(%arg0: i32) -> (i32, i32) {
    %c0_i32 = arith.constant 0 : i32
    %c0_i32_0 = arith.constant 0 : i32
    %c0_i32_1 = arith.constant 0 : i32
    return %c0_i32, %c0_i32_0 : i32, i32
  }
  func.func @transform_2(%arg0: i32) -> (i32, i32) {
    %c0_i32 = arith.constant 0 : i32
    %c0_i32_0 = arith.constant 0 : i32
    %c0_i32_1 = arith.constant 0 : i32
    return %c0_i32, %c0_i32_0 : i32, i32
  }
  func.func @transform_3(%arg0: i32) -> (i32, i32) {
    %c0_i32 = arith.constant 0 : i32
    %c0_i32_0 = arith.constant 0 : i32
    %c0_i32_1 = arith.constant 0 : i32
    return %c0_i32, %c0_i32_0 : i32, i32
  }
  func.func @transform_4(%arg0: i32) -> (i32, i32) {
    %c0_i32 = arith.constant 0 : i32
    %c0_i32_0 = arith.constant 0 : i32
    %c0_i32_1 = arith.constant 0 : i32
    return %c0_i32, %c0_i32_0 : i32, i32
  }
  func.func @transform_5(%arg0: i32) -> (i32, i32) {
    %c0_i32 = arith.constant 0 : i32
    %c0_i32_0 = arith.constant 0 : i32
    %c0_i32_1 = arith.constant 0 : i32
    return %c0_i32, %c0_i32_0 : i32, i32
  }
  func.func @transform_6(%arg0: i32) -> (i32, i32) {
    %c0_i32 = arith.constant 0 : i32
    %c0_i32_0 = arith.constant 0 : i32
    %c0_i32_1 = arith.constant 0 : i32
    return %c0_i32, %c0_i32_0 : i32, i32
  }
  func.func @transform_7(%arg0: i32) -> (i32, i32) {
    %c0_i32 = arith.constant 0 : i32
    %c0_i32_0 = arith.constant 0 : i32
    %c0_i32_1 = arith.constant 0 : i32
    return %c0_i32, %c0_i32_0 : i32, i32
  }
  func.func @transform_8(%arg0: i32) -> (i32, i32) {
    %c0_i32 = arith.constant 0 : i32
    %c0_i32_0 = arith.constant 0 : i32
    %c0_i32_1 = arith.constant 0 : i32
    return %c0_i32, %c0_i32_0 : i32, i32
  }
  func.func @transform_9(%arg0: i32) -> (i32, i32) {
    %c0_i32 = arith.constant 0 : i32
    %c0_i32_0 = arith.constant 0 : i32
    return %arg0, %c0_i32 : i32, i32
  }
}

module attributes {stable_mosaic.version = 11 : i64} {
  func.func @kernel(%arg0: i32, %arg1: memref<8x128xbf16, #tpu.memory_space<vmem>>, %arg2: memref<128x128xbf16, #tpu.memory_space<vmem>>, %arg3: memref<128x128xbf16, #tpu.memory_space<vmem>>, %arg4: memref<128x128xbf16, #tpu.memory_space<vmem>>, %arg5: memref<128x128xbf16, #tpu.memory_space<vmem>>, %arg6: memref<1x128xf32, #tpu.memory_space<vmem>>, %arg7: memref<1x128xf32, #tpu.memory_space<vmem>>, %arg8: memref<1x128xf32, #tpu.memory_space<vmem>>, %arg9: memref<1x128xf32, #tpu.memory_space<vmem>>, %arg10: memref<8x128xbf16, #tpu.memory_space<vmem>>) attributes {dimension_semantics = [#tpu.dimension_semantics<parallel>], iteration_bounds = array<i64: 1>, scalar_prefetch = 0 : i64, scratch_operands = 0 : i64, tpu.core_type = #tpu.core_type<tc>, window_params = [{transform_indices = @transform_0, window_bounds = array<i64: 8, 128>}, {pipeline_mode = #tpu.pipeline_mode<synchronous>, transform_indices = @transform_1, window_bounds = array<i64: 128, 128>}, {pipeline_mode = #tpu.pipeline_mode<synchronous>, transform_indices = @transform_2, window_bounds = array<i64: 128, 128>}, {pipeline_mode = #tpu.pipeline_mode<synchronous>, transform_indices = @transform_3, window_bounds = array<i64: 128, 128>}, {pipeline_mode = #tpu.pipeline_mode<synchronous>, transform_indices = @transform_4, window_bounds = array<i64: 128, 128>}, {pipeline_mode = #tpu.pipeline_mode<synchronous>, transform_indices = @transform_5, window_bounds = array<i64: 1, 128>}, {pipeline_mode = #tpu.pipeline_mode<synchronous>, transform_indices = @transform_6, window_bounds = array<i64: 1, 128>}, {pipeline_mode = #tpu.pipeline_mode<synchronous>, transform_indices = @transform_7, window_bounds = array<i64: 1, 128>}, {pipeline_mode = #tpu.pipeline_mode<synchronous>, transform_indices = @transform_8, window_bounds = array<i64: 1, 128>}, {transform_indices = @transform_9, window_bounds = array<i64: 8, 128>}]} {
    %c0 = arith.constant 0 : index
    %c0_0 = arith.constant 0 : index
    %0 = vector.load %arg1[%c0, %c0_0] : memref<8x128xbf16, #tpu.memory_space<vmem>>, vector<8x128xbf16>
    %c0_1 = arith.constant 0 : index
    %c0_2 = arith.constant 0 : index
    %1 = vector.load %arg2[%c0_1, %c0_2] : memref<128x128xbf16, #tpu.memory_space<vmem>>, vector<128x128xbf16>
    %cst = arith.constant dense<0.000000e+00> : vector<8x128xf32>
    %2 = tpu.matmul %0, %1, %cst {dimension_numbers = #tpu.dot_dimension_numbers<[1], [0], [0], [1], [0, 0, 1, 1], [], []>} : vector<8x128xbf16>, vector<128x128xbf16>, vector<8x128xf32> -> vector<8x128xf32>
    %3 = arith.truncf %2 : vector<8x128xf32> to vector<8x128xbf16>
    %c0_3 = arith.constant 0 : index
    %c0_4 = arith.constant 0 : index
    %4 = vector.load %arg6[%c0_3, %c0_4] : memref<1x128xf32, #tpu.memory_space<vmem>>, vector<1x128xf32>
    %5 = arith.truncf %4 : vector<1x128xf32> to vector<1x128xbf16>
    %6 = vector.broadcast %5 : vector<1x128xbf16> to vector<8x128xbf16>
    %7 = arith.addf %3, %6 : vector<8x128xbf16>
    %8 = math.tanh %7 : vector<8x128xbf16>
    %c0_5 = arith.constant 0 : index
    %c0_6 = arith.constant 0 : index
    %9 = vector.load %arg3[%c0_5, %c0_6] : memref<128x128xbf16, #tpu.memory_space<vmem>>, vector<128x128xbf16>
    %cst_7 = arith.constant dense<0.000000e+00> : vector<8x128xf32>
    %10 = tpu.matmul %8, %9, %cst_7 {dimension_numbers = #tpu.dot_dimension_numbers<[1], [0], [0], [1], [0, 0, 1, 1], [], []>} : vector<8x128xbf16>, vector<128x128xbf16>, vector<8x128xf32> -> vector<8x128xf32>
    %11 = arith.truncf %10 : vector<8x128xf32> to vector<8x128xbf16>
    %c0_8 = arith.constant 0 : index
    %c0_9 = arith.constant 0 : index
    %12 = vector.load %arg7[%c0_8, %c0_9] : memref<1x128xf32, #tpu.memory_space<vmem>>, vector<1x128xf32>
    %13 = arith.truncf %12 : vector<1x128xf32> to vector<1x128xbf16>
    %14 = vector.broadcast %13 : vector<1x128xbf16> to vector<8x128xbf16>
    %15 = arith.addf %11, %14 : vector<8x128xbf16>
    %16 = math.tanh %15 : vector<8x128xbf16>
    %c0_10 = arith.constant 0 : index
    %c0_11 = arith.constant 0 : index
    %17 = vector.load %arg4[%c0_10, %c0_11] : memref<128x128xbf16, #tpu.memory_space<vmem>>, vector<128x128xbf16>
    %cst_12 = arith.constant dense<0.000000e+00> : vector<8x128xf32>
    %18 = tpu.matmul %16, %17, %cst_12 {dimension_numbers = #tpu.dot_dimension_numbers<[1], [0], [0], [1], [0, 0, 1, 1], [], []>} : vector<8x128xbf16>, vector<128x128xbf16>, vector<8x128xf32> -> vector<8x128xf32>
    %19 = arith.truncf %18 : vector<8x128xf32> to vector<8x128xbf16>
    %c0_13 = arith.constant 0 : index
    %c0_14 = arith.constant 0 : index
    %20 = vector.load %arg8[%c0_13, %c0_14] : memref<1x128xf32, #tpu.memory_space<vmem>>, vector<1x128xf32>
    %21 = arith.truncf %20 : vector<1x128xf32> to vector<1x128xbf16>
    %22 = vector.broadcast %21 : vector<1x128xbf16> to vector<8x128xbf16>
    %23 = arith.addf %19, %22 : vector<8x128xbf16>
    %24 = math.tanh %23 : vector<8x128xbf16>
    %c0_15 = arith.constant 0 : index
    %c0_16 = arith.constant 0 : index
    %25 = vector.load %arg5[%c0_15, %c0_16] : memref<128x128xbf16, #tpu.memory_space<vmem>>, vector<128x128xbf16>
    %cst_17 = arith.constant dense<0.000000e+00> : vector<8x128xf32>
    %26 = tpu.matmul %24, %25, %cst_17 {dimension_numbers = #tpu.dot_dimension_numbers<[1], [0], [0], [1], [0, 0, 1, 1], [], []>} : vector<8x128xbf16>, vector<128x128xbf16>, vector<8x128xf32> -> vector<8x128xf32>
    %c0_18 = arith.constant 0 : index
    %c0_19 = arith.constant 0 : index
    %27 = vector.load %arg9[%c0_18, %c0_19] : memref<1x128xf32, #tpu.memory_space<vmem>>, vector<1x128xf32>
    %28 = vector.broadcast %27 : vector<1x128xf32> to vector<8x128xf32>
    %29 = arith.addf %26, %28 : vector<8x128xf32>
    %30 = arith.truncf %29 : vector<8x128xf32> to vector<8x128xbf16>
    %c0_20 = arith.constant 0 : index
    %c0_21 = arith.constant 0 : index
    %31 = vector.load %arg10[%c0_20, %c0_21] : memref<8x128xbf16, #tpu.memory_space<vmem>>, vector<8x128xbf16>
    tpu.vector_store %arg10[%c0_20, %c0_21], %30 {strides = array<i32>} : memref<8x128xbf16, #tpu.memory_space<vmem>>, vector<8x128xbf16>,
    return
  }
  func.func @transform_0(%arg0: i32) -> (i32, i32) {
    %c0_i32 = arith.constant 0 : i32
    %c0_i32_0 = arith.constant 0 : i32
    return %arg0, %c0_i32 : i32, i32
  }
  func.func @transform_1(%arg0: i32) -> (i32, i32) {
    %c0_i32 = arith.constant 0 : i32
    %c0_i32_0 = arith.constant 0 : i32
    %c0_i32_1 = arith.constant 0 : i32
    return %c0_i32, %c0_i32_0 : i32, i32
  }
  func.func @transform_2(%arg0: i32) -> (i32, i32) {
    %c0_i32 = arith.constant 0 : i32
    %c0_i32_0 = arith.constant 0 : i32
    %c0_i32_1 = arith.constant 0 : i32
    return %c0_i32, %c0_i32_0 : i32, i32
  }
  func.func @transform_3(%arg0: i32) -> (i32, i32) {
    %c0_i32 = arith.constant 0 : i32
    %c0_i32_0 = arith.constant 0 : i32
    %c0_i32_1 = arith.constant 0 : i32
    return %c0_i32, %c0_i32_0 : i32, i32
  }
  func.func @transform_4(%arg0: i32) -> (i32, i32) {
    %c0_i32 = arith.constant 0 : i32
    %c0_i32_0 = arith.constant 0 : i32
    %c0_i32_1 = arith.constant 0 : i32
    return %c0_i32, %c0_i32_0 : i32, i32
  }
  func.func @transform_5(%arg0: i32) -> (i32, i32) {
    %c0_i32 = arith.constant 0 : i32
    %c0_i32_0 = arith.constant 0 : i32
    %c0_i32_1 = arith.constant 0 : i32
    return %c0_i32, %c0_i32_0 : i32, i32
  }
  func.func @transform_6(%arg0: i32) -> (i32, i32) {
    %c0_i32 = arith.constant 0 : i32
    %c0_i32_0 = arith.constant 0 : i32
    %c0_i32_1 = arith.constant 0 : i32
    return %c0_i32, %c0_i32_0 : i32, i32
  }
  func.func @transform_7(%arg0: i32) -> (i32, i32) {
    %c0_i32 = arith.constant 0 : i32
    %c0_i32_0 = arith.constant 0 : i32
    %c0_i32_1 = arith.constant 0 : i32
    return %c0_i32, %c0_i32_0 : i32, i32
  }
  func.func @transform_8(%arg0: i32) -> (i32, i32) {
    %c0_i32 = arith.constant 0 : i32
    %c0_i32_0 = arith.constant 0 : i32
    %c0_i32_1 = arith.constant 0 : i32
    return %c0_i32, %c0_i32_0 : i32, i32
  }
  func.func @transform_9(%arg0: i32) -> (i32, i32) {
    %c0_i32 = arith.constant 0 : i32
    %c0_i32_0 = arith.constant 0 : i32
    return %arg0, %c0_i32 : i32, i32
  }
}

</mosaic_0001>

<llo_original>
// kernel: tpu_custom_call.1
$region0: #{tpu_custom_call.1}
  #allocation0 [shape = 'u32[]', space=smem, size = 0x4, offset = 0x4, fixed_abs, tag = 'smem constant byte address 0x4 - core index']
  #allocation1 [shape = 'u32[72,128]{1,0:T(1,128)}', space=vmem, size = 0x9000, scoped, tag = 'internal scratch']
  %s0 = inlined_call_operand.hbm [shape: bf16[8,128], index: 0, kind: input, shape index: {}]
  %s1 = inlined_call_operand.hbm [shape: bf16[128,128], index: 1, kind: input, shape index: {}]
  %s2 = inlined_call_operand.hbm [shape: bf16[128,128], index: 2, kind: input, shape index: {}]
  %s3 = inlined_call_operand.hbm [shape: bf16[128,128], index: 3, kind: input, shape index: {}]
  %s4 = inlined_call_operand.hbm [shape: bf16[128,128], index: 4, kind: input, shape index: {}]
  %s5 = inlined_call_operand.vmem [shape: f32[1,128], index: 5, kind: input, shape index: {}]
  %s6 = inlined_call_operand.vmem [shape: f32[1,128], index: 6, kind: input, shape index: {}]
  %s7 = inlined_call_operand.vmem [shape: f32[1,128], index: 7, kind: input, shape index: {}]
  %s8 = inlined_call_operand.vmem [shape: f32[1,128], index: 8, kind: input, shape index: {}]
  %s9 = inlined_call_operand.hbm [shape: bf16[8,128], index: 9, kind: output, shape index: {}]
  %s10 = sld [smem:[#allocation0]]
  $region66: #{tpu_custom_call.1} parent=0
    _
  %s12 = ssub.s32 1, %s10
  %s13 = scalar_select 0, %s12, %s10
  $region1: #{tpu_custom_call.1} parent=0
    #allocation2 [shape = 'u8[2048]{0}', space=vmem, size = 0x800, scoped, tag = 'input window, operand 0, single buffered']
    #allocation3 [shape = 's32[1]{0}', space=sflag, size = 0x4, scoped, tag = 'scoped memory for tpu_custom_call.1']
    #allocation4 [shape = 's32[1]{0}', space=sflag, size = 0x4, scoped, tag = 'scoped memory for tpu_custom_call.1']
    #allocation5 [shape = 'u8[32768]{0}', space=vmem, size = 0x8000, scoped, tag = 'input window, operand 1, single buffered']
    #allocation6 [shape = 's32[1]{0}', space=sflag, size = 0x4, scoped, tag = 'scoped memory for tpu_custom_call.1']
    #allocation7 [shape = 'u8[32768]{0}', space=vmem, size = 0x8000, scoped, tag = 'input window, operand 2, single buffered']
    #allocation8 [shape = 'u8[32768]{0}', space=vmem, size = 0x8000, scoped, tag = 'input window, operand 3, single buffered']
    #allocation9 [shape = 's32[1]{0}', space=sflag, size = 0x4, scoped, tag = 'scoped memory for tpu_custom_call.1']
    #allocation10 [shape = 'u8[32768]{0}', space=vmem, size = 0x8000, scoped, tag = 'input window, operand 4, single buffered']
    #allocation11 [shape = 'u8[2048]{0}', space=vmem, size = 0x800, scoped, tag = 'output window, operand 0, single buffered']
    %14 = vsyncpa [#allocation3], 0
    %15 = vsyncpa [#allocation6], 0
    %16 = vsyncpa [#allocation9], 0
    %17 = vsyncpa [#allocation4], 0
    // Predicated region
    $region2: #{tpu_custom_call.1} parent=1 // pred_check
      _
    $region3: #{tpu_custom_call.1} parent=1 // pred_check_branch
      %19 = sbr.rel (0) target = $region5
    $region4: #{tpu_custom_call.1} parent=1 // pred_region
      %21 = vsyncadd [#allocation3], 0
      %s23 = sshll.u32 %s0, 4
      %s24 = int_to_ptr.hbm [resolvable:$true] %s23
      %s25 = sshll.u32 [#allocation2], 4
      %s26 = int_to_ptr.vmem [resolvable:$true] %s25
      %28 = dma.hbm_to_vmem [thread:$0]  %s24, 64, %s26, [#allocation3]
    $region5: #{tpu_custom_call.1} parent=1 // pred_fallthru
      _
    // Predicated region
    $region6: #{tpu_custom_call.1} parent=1 // pred_check
      _
    $region7: #{tpu_custom_call.1} parent=1 // pred_check_branch
      %30 = sbr.rel (0) target = $region9
    $region8: #{tpu_custom_call.1} parent=1 // pred_region
      %32 = vsyncadd [#allocation6], 0
      %s33 = sshll.u32 %s1, 4
      %s34 = int_to_ptr.hbm [resolvable:$true] %s33
      %s35 = sshll.u32 [#allocation5], 4
      %s36 = int_to_ptr.vmem [resolvable:$true] %s35
      %41 = dma.hbm_to_vmem [thread:$0]  %s34, 1024, %s36, [#allocation6], 64, 64, 4
    $region9: #{tpu_custom_call.1} parent=1 // pred_fallthru
      _
    // Predicated region
    $region10: #{tpu_custom_call.1} parent=1 // pred_check
      _
    $region11: #{tpu_custom_call.1} parent=1 // pred_check_branch
      %43 = sbr.rel (0) target = $region13
    $region12: #{tpu_custom_call.1} parent=1 // pred_region
      %45 = vsyncadd [#allocation6], 0
      %s46 = sshll.u32 %s2, 4
      %s47 = int_to_ptr.hbm [resolvable:$true] %s46
      %s48 = sshll.u32 [#allocation7], 4
      %s49 = int_to_ptr.vmem [resolvable:$true] %s48
      %54 = dma.hbm_to_vmem [thread:$0]  %s47, 1024, %s49, [#allocation6], 64, 64, 4
    $region13: #{tpu_custom_call.1} parent=1 // pred_fallthru
      _
    // Predicated region
    $region14: #{tpu_custom_call.1} parent=1 // pred_check
      _
    $region15: #{tpu_custom_call.1} parent=1 // pred_check_branch
      %56 = sbr.rel (0) target = $region17
    $region16: #{tpu_custom_call.1} parent=1 // pred_region
      %58 = vsyncadd [#allocation9], 0
      %s59 = sshll.u32 %s3, 4
      %s60 = int_to_ptr.hbm [resolvable:$true] %s59
      %s61 = sshll.u32 [#allocation8], 4
      %s62 = int_to_ptr.vmem [resolvable:$true] %s61
      %67 = dma.hbm_to_vmem [thread:$0]  %s60, 1024, %s62, [#allocation9], 64, 64, 4
    $region17: #{tpu_custom_call.1} parent=1 // pred_fallthru
      _
    // Predicated region
    $region18: #{tpu_custom_call.1} parent=1 // pred_check
      _
    $region19: #{tpu_custom_call.1} parent=1 // pred_check_branch
      %69 = sbr.rel (0) target = $region21
    $region20: #{tpu_custom_call.1} parent=1 // pred_region
      %71 = vsyncadd [#allocation9], 0
      %s72 = sshll.u32 %s4, 4
      %s73 = int_to_ptr.hbm [resolvable:$true] %s72
      %s74 = sshll.u32 [#allocation10], 4
      %s75 = int_to_ptr.vmem [resolvable:$true] %s74
      %80 = dma.hbm_to_vmem [thread:$0]  %s73, 1024, %s75, [#allocation9], 64, 64, 4
    $region21: #{tpu_custom_call.1} parent=1 // pred_fallthru
      _
    // Predicated region
    $region22: #{tpu_custom_call.1} parent=1 // pred_check
      _
    $region23: #{tpu_custom_call.1} parent=1 // pred_check_branch
      %82 = sbr.rel (0) target = $region25
    $region24: #{tpu_custom_call.1} parent=1 // pred_region
      _
    $region25: #{tpu_custom_call.1} parent=1 // pred_fallthru
      _
    // Predicated region
    $region26: #{tpu_custom_call.1} parent=1 // pred_check
      _
    $region27: #{tpu_custom_call.1} parent=1 // pred_check_branch
      %84 = sbr.rel (0) target = $region29
    $region28: #{tpu_custom_call.1} parent=1 // pred_region
      _
    $region29: #{tpu_custom_call.1} parent=1 // pred_fallthru
      _
    // Predicated region
    $region30: #{tpu_custom_call.1} parent=1 // pred_check
      _
    $region31: #{tpu_custom_call.1} parent=1 // pred_check_branch
      %86 = sbr.rel (0) target = $region33
    $region32: #{tpu_custom_call.1} parent=1 // pred_region
      _
    $region33: #{tpu_custom_call.1} parent=1 // pred_fallthru
      _
    // Predicated region
    $region34: #{tpu_custom_call.1} parent=1 // pred_check
      _
    $region35: #{tpu_custom_call.1} parent=1 // pred_check_branch
      %88 = sbr.rel (0) target = $region37
    $region36: #{tpu_custom_call.1} parent=1 // pred_region
      _
    $region37: #{tpu_custom_call.1} parent=1 // pred_fallthru
      _
    // Predicated region
    $region38: #{tpu_custom_call.1} parent=1 // pred_check
      _
    $region39: #{tpu_custom_call.1} parent=1 // pred_check_branch
      %90 = sbr.rel (0) target = $region41
    $region40: #{tpu_custom_call.1} parent=1 // pred_region
      %92 = dma.done [#allocation3], 64
    $region41: #{tpu_custom_call.1} parent=1 // pred_fallthru
      _
    // Predicated region
    $region42: #{tpu_custom_call.1} parent=1 // pred_check
      _
    $region43: #{tpu_custom_call.1} parent=1 // pred_check_branch
      %94 = sbr.rel (0) target = $region45
    $region44: #{tpu_custom_call.1} parent=1 // pred_region
      %96 = dma.done [#allocation6], 1024
    $region45: #{tpu_custom_call.1} parent=1 // pred_fallthru
      _
    // Predicated region
    $region46: #{tpu_custom_call.1} parent=1 // pred_check
      _
    $region47: #{tpu_custom_call.1} parent=1 // pred_check_branch
      %98 = sbr.rel (0) target = $region49
    $region48: #{tpu_custom_call.1} parent=1 // pred_region
      %100 = dma.done [#allocation6], 1024
    $region49: #{tpu_custom_call.1} parent=1 // pred_fallthru
      _
    // Predicated region
    $region50: #{tpu_custom_call.1} parent=1 // pred_check
      _
    $region51: #{tpu_custom_call.1} parent=1 // pred_check_branch
      %102 = sbr.rel (0) target = $region53
    $region52: #{tpu_custom_call.1} parent=1 // pred_region
      %104 = dma.done [#allocation9], 1024
    $region53: #{tpu_custom_call.1} parent=1 // pred_fallthru
      _
    // Predicated region
    $region54: #{tpu_custom_call.1} parent=1 // pred_check
      _
    $region55: #{tpu_custom_call.1} parent=1 // pred_check_branch
      %106 = sbr.rel (0) target = $region57
    $region56: #{tpu_custom_call.1} parent=1 // pred_region
      %108 = dma.done [#allocation9], 1024
    $region57: #{tpu_custom_call.1} parent=1 // pred_fallthru
      _
    %v109 = vld [vmem:[#allocation2] sm:$0xf]
    %v110 = vld [vmem:[#allocation5] sm:$0xf]
    %v111 = vld [vmem:[#allocation5 + $0x4] sm:$0xf]
    %v112 = vld [vmem:[#allocation5 + $0x8] sm:$0xf]
    %v113 = vld [vmem:[#allocation5 + $0xc] sm:$0xf]
    %v114 = vld [vmem:[#allocation5 + $0x10] sm:$0xf]
    %v115 = vld [vmem:[#allocation5 + $0x14] sm:$0xf]
    %v116 = vld [vmem:[#allocation5 + $0x18] sm:$0xf]
    %v117 = vld [vmem:[#allocation5 + $0x1c] sm:$0xf]
    %v118 = vld [vmem:[#allocation5 + $0x20] sm:$0xf]
    %v119 = vld [vmem:[#allocation5 + $0x24] sm:$0xf]
    %v120 = vld [vmem:[#allocation5 + $0x28] sm:$0xf]
    %v121 = vld [vmem:[#allocation5 + $0x2c] sm:$0xf]
    %v122 = vld [vmem:[#allocation5 + $0x30] sm:$0xf]
    %v123 = vld [vmem:[#allocation5 + $0x34] sm:$0xf]
    %v124 = vld [vmem:[#allocation5 + $0x38] sm:$0xf]
    %v125 = vld [vmem:[#allocation5 + $0x3c] sm:$0xf]
    %v142 = vunpack.c.l.b16 %v110
    %v143 = vunpack.c.l.b16 %v111
    %v144 = vunpack.c.l.b16 %v112
    %v145 = vunpack.c.l.b16 %v113
    %v146 = vunpack.c.l.b16 %v114
    %v147 = vunpack.c.l.b16 %v115
    %v148 = vunpack.c.l.b16 %v116
    %v149 = vunpack.c.l.b16 %v117
    %v150 = vunpack.c.l.b16 %v118
    %v151 = vunpack.c.l.b16 %v119
    %v152 = vunpack.c.l.b16 %v120
    %v153 = vunpack.c.l.b16 %v121
    %v154 = vunpack.c.l.b16 %v122
    %v155 = vunpack.c.l.b16 %v123
    %v156 = vunpack.c.l.b16 %v124
    %v157 = vunpack.c.l.b16 %v125
    %v158 = vpack.c.b16 %v143, %v142
    %v159 = vpack.c.b16 %v145, %v144
    %v160 = vpack.c.b16 %v147, %v146
    %v161 = vpack.c.b16 %v149, %v148
    %v162 = vpack.c.b16 %v151, %v150
    %v163 = vpack.c.b16 %v153, %v152
    %v164 = vpack.c.b16 %v155, %v154
    %v165 = vpack.c.b16 %v157, %v156
    %174 = vmatpush.bf16.msra.mxu0 %v165
    %175 = vmatpush.bf16.msra.mxu0 %v164
    %176 = vmatpush.bf16.msra.mxu0 %v163
    %177 = vmatpush.bf16.msra.mxu0 %v162
    %178 = vmatpush.bf16.msra.mxu0 %v161
    %179 = vmatpush.bf16.msra.mxu0 %v160
    %180 = vmatpush.bf16.msra.mxu0 %v159
    %181 = vmatpush.bf16.msra.mxu0 %v158
    %182 = vmatmul.bf16.gmra.mxu0 %v109
    %v183 = vpop.f32.mrf.mxu0
    %v184 = vadd.f32 0.0, %v183
    %v185 = vpop.f32.mrf.mxu0
    %186 = vdwg.mxu0
    %v187 = vpack.c.bf16 %v184, %v184
    %v188 = vld [vmem:[%s5] sm:$0x1]
    %v189 = vpack.c.bf16 %v188, %v188
    %v191 = vpack.i.b16 %v189, %v189
    %v193 = vperm.slane %v191, 0
    %v194 = vunpack.c.l.bf16 %v187
    %v195 = vunpack.c.l.bf16 %v193
    %v196 = vadd.f32 %v194, %v195
    %v197 = vpack.c.bf16 %v196, %v196
    %v198 = vunpack.c.l.bf16 %v197
    %v199 = vtanh.pop %v198
    %v200 = vpack.c.bf16 %v199, %v199
    %v201 = vld [vmem:[#allocation7] sm:$0xf]
    %v202 = vld [vmem:[#allocation7 + $0x4] sm:$0xf]
    %v203 = vld [vmem:[#allocation7 + $0x8] sm:$0xf]
    %v204 = vld [vmem:[#allocation7 + $0xc] sm:$0xf]
    %v205 = vld [vmem:[#allocation7 + $0x10] sm:$0xf]
    %v206 = vld [vmem:[#allocation7 + $0x14] sm:$0xf]
    %v207 = vld [vmem:[#allocation7 + $0x18] sm:$0xf]
    %v208 = vld [vmem:[#allocation7 + $0x1c] sm:$0xf]
    %v209 = vld [vmem:[#allocation7 + $0x20] sm:$0xf]
    %v210 = vld [vmem:[#allocation7 + $0x24] sm:$0xf]
    %v211 = vld [vmem:[#allocation7 + $0x28] sm:$0xf]
    %v212 = vld [vmem:[#allocation7 + $0x2c] sm:$0xf]
    %v213 = vld [vmem:[#allocation7 + $0x30] sm:$0xf]
    %v214 = vld [vmem:[#allocation7 + $0x34] sm:$0xf]
    %v215 = vld [vmem:[#allocation7 + $0x38] sm:$0xf]
    %v216 = vld [vmem:[#allocation7 + $0x3c] sm:$0xf]
    %v233 = vunpack.c.l.b16 %v201
    %v234 = vunpack.c.l.b16 %v202
    %v235 = vunpack.c.l.b16 %v203
    %v236 = vunpack.c.l.b16 %v204
    %v237 = vunpack.c.l.b16 %v205
    %v238 = vunpack.c.l.b16 %v206
    %v239 = vunpack.c.l.b16 %v207
    %v240 = vunpack.c.l.b16 %v208
    %v241 = vunpack.c.l.b16 %v209
    %v242 = vunpack.c.l.b16 %v210
    %v243 = vunpack.c.l.b16 %v211
    %v244 = vunpack.c.l.b16 %v212
    %v245 = vunpack.c.l.b16 %v213
    %v246 = vunpack.c.l.b16 %v214
    %v247 = vunpack.c.l.b16 %v215
    %v248 = vunpack.c.l.b16 %v216
    %v249 = vpack.c.b16 %v234, %v233
    %v250 = vpack.c.b16 %v236, %v235
    %v251 = vpack.c.b16 %v238, %v237
    %v252 = vpack.c.b16 %v240, %v239
    %v253 = vpack.c.b16 %v242, %v241
    %v254 = vpack.c.b16 %v244, %v243
    %v255 = vpack.c.b16 %v246, %v245
    %v256 = vpack.c.b16 %v248, %v247
    %265 = vmatpush.bf16.msra.mxu0 %v256
    %266 = vmatpush.bf16.msra.mxu0 %v255
    %267 = vmatpush.bf16.msra.mxu0 %v254
    %268 = vmatpush.bf16.msra.mxu0 %v253
    %269 = vmatpush.bf16.msra.mxu0 %v252
    %270 = vmatpush.bf16.msra.mxu0 %v251
    %271 = vmatpush.bf16.msra.mxu0 %v250
    %272 = vmatpush.bf16.msra.mxu0 %v249
    %273 = vmatmul.bf16.gmra.mxu0 %v200
    %v274 = vpop.f32.mrf.mxu0
    %v275 = vadd.f32 0.0, %v274
    %v276 = vpop.f32.mrf.mxu0
    %277 = vdwg.mxu0
    %v278 = vpack.c.bf16 %v275, %v275
    %v279 = vld [vmem:[%s6] sm:$0x1]
    %v280 = vpack.c.bf16 %v279, %v279
    %v282 = vpack.i.b16 %v280, %v280
    %v284 = vperm.slane %v282, 0
    %v285 = vunpack.c.l.bf16 %v278
    %v286 = vunpack.c.l.bf16 %v284
    %v287 = vadd.f32 %v285, %v286
    %v288 = vpack.c.bf16 %v287, %v287
    %v289 = vunpack.c.l.bf16 %v288
    %v290 = vtanh.pop %v289
    %v291 = vpack.c.bf16 %v290, %v290
    %v292 = vld [vmem:[#allocation8] sm:$0xf]
    %v293 = vld [vmem:[#allocation8 + $0x4] sm:$0xf]
    %v294 = vld [vmem:[#allocation8 + $0x8] sm:$0xf]
    %v295 = vld [vmem:[#allocation8 + $0xc] sm:$0xf]
    %v296 = vld [vmem:[#allocation8 + $0x10] sm:$0xf]
    %v297 = vld [vmem:[#allocation8 + $0x14] sm:$0xf]
    %v298 = vld [vmem:[#allocation8 + $0x18] sm:$0xf]
    %v299 = vld [vmem:[#allocation8 + $0x1c] sm:$0xf]
    %v300 = vld [vmem:[#allocation8 + $0x20] sm:$0xf]
    %v301 = vld [vmem:[#allocation8 + $0x24] sm:$0xf]
    %v302 = vld [vmem:[#allocation8 + $0x28] sm:$0xf]
    %v303 = vld [vmem:[#allocation8 + $0x2c] sm:$0xf]
    %v304 = vld [vmem:[#allocation8 + $0x30] sm:$0xf]
    %v305 = vld [vmem:[#allocation8 + $0x34] sm:$0xf]
    %v306 = vld [vmem:[#allocation8 + $0x38] sm:$0xf]
    %v307 = vld [vmem:[#allocation8 + $0x3c] sm:$0xf]
    %v324 = vunpack.c.l.b16 %v292
    %v325 = vunpack.c.l.b16 %v293
    %v326 = vunpack.c.l.b16 %v294
    %v327 = vunpack.c.l.b16 %v295
    %v328 = vunpack.c.l.b16 %v296
    %v329 = vunpack.c.l.b16 %v297
    %v330 = vunpack.c.l.b16 %v298
    %v331 = vunpack.c.l.b16 %v299
    %v332 = vunpack.c.l.b16 %v300
    %v333 = vunpack.c.l.b16 %v301
    %v334 = vunpack.c.l.b16 %v302
    %v335 = vunpack.c.l.b16 %v303
    %v336 = vunpack.c.l.b16 %v304
    %v337 = vunpack.c.l.b16 %v305
    %v338 = vunpack.c.l.b16 %v306
    %v339 = vunpack.c.l.b16 %v307
    %v340 = vpack.c.b16 %v325, %v324
    %v341 = vpack.c.b16 %v327, %v326
    %v342 = vpack.c.b16 %v329, %v328
    %v343 = vpack.c.b16 %v331, %v330
    %v344 = vpack.c.b16 %v333, %v332
    %v345 = vpack.c.b16 %v335, %v334
    %v346 = vpack.c.b16 %v337, %v336
    %v347 = vpack.c.b16 %v339, %v338
    %356 = vmatpush.bf16.msra.mxu0 %v347
    %357 = vmatpush.bf16.msra.mxu0 %v346
    %358 = vmatpush.bf16.msra.mxu0 %v345
    %359 = vmatpush.bf16.msra.mxu0 %v344
    %360 = vmatpush.bf16.msra.mxu0 %v343
    %361 = vmatpush.bf16.msra.mxu0 %v342
    %362 = vmatpush.bf16.msra.mxu0 %v341
    %363 = vmatpush.bf16.msra.mxu0 %v340
    %364 = vmatmul.bf16.gmra.mxu0 %v291
    %v365 = vpop.f32.mrf.mxu0
    %v366 = vadd.f32 0.0, %v365
    %v367 = vpop.f32.mrf.mxu0
    %368 = vdwg.mxu0
    %v369 = vpack.c.bf16 %v366, %v366
    %v370 = vld [vmem:[%s7] sm:$0x1]
    %v371 = vpack.c.bf16 %v370, %v370
    %v373 = vpack.i.b16 %v371, %v371
    %v375 = vperm.slane %v373, 0
    %v376 = vunpack.c.l.bf16 %v369
    %v377 = vunpack.c.l.bf16 %v375
    %v378 = vadd.f32 %v376, %v377
    %v379 = vpack.c.bf16 %v378, %v378
    %v380 = vunpack.c.l.bf16 %v379
    %v381 = vtanh.pop %v380
    %v382 = vpack.c.bf16 %v381, %v381
    %v383 = vld [vmem:[#allocation10] sm:$0xf]
    %v384 = vld [vmem:[#allocation10 + $0x4] sm:$0xf]
    %v385 = vld [vmem:[#allocation10 + $0x8] sm:$0xf]
    %v386 = vld [vmem:[#allocation10 + $0xc] sm:$0xf]
    %v387 = vld [vmem:[#allocation10 + $0x10] sm:$0xf]
    %v388 = vld [vmem:[#allocation10 + $0x14] sm:$0xf]
    %v389 = vld [vmem:[#allocation10 + $0x18] sm:$0xf]
    %v390 = vld [vmem:[#allocation10 + $0x1c] sm:$0xf]
    %v391 = vld [vmem:[#allocation10 + $0x20] sm:$0xf]
    %v392 = vld [vmem:[#allocation10 + $0x24] sm:$0xf]
    %v393 = vld [vmem:[#allocation10 + $0x28] sm:$0xf]
    %v394 = vld [vmem:[#allocation10 + $0x2c] sm:$0xf]
    %v395 = vld [vmem:[#allocation10 + $0x30] sm:$0xf]
    %v396 = vld [vmem:[#allocation10 + $0x34] sm:$0xf]
    %v397 = vld [vmem:[#allocation10 + $0x38] sm:$0xf]
    %v398 = vld [vmem:[#allocation10 + $0x3c] sm:$0xf]
    %v399 = vld [vmem:[%s8] sm:$0x1]
    %v401 = vperm.slane %v399, 0
    %v419 = vunpack.c.l.b16 %v383
    %v420 = vunpack.c.l.b16 %v384
    %v421 = vunpack.c.l.b16 %v385
    %v422 = vunpack.c.l.b16 %v386
    %v423 = vunpack.c.l.b16 %v387
    %v424 = vunpack.c.l.b16 %v388
    %v425 = vunpack.c.l.b16 %v389
    %v426 = vunpack.c.l.b16 %v390
    %v427 = vunpack.c.l.b16 %v391
    %v428 = vunpack.c.l.b16 %v392
    %v429 = vunpack.c.l.b16 %v393
    %v430 = vunpack.c.l.b16 %v394
    %v431 = vunpack.c.l.b16 %v395
    %v432 = vunpack.c.l.b16 %v396
    %v433 = vunpack.c.l.b16 %v397
    %v434 = vunpack.c.l.b16 %v398
    %v435 = vpack.c.b16 %v420, %v419
    %v436 = vpack.c.b16 %v422, %v421
    %v437 = vpack.c.b16 %v424, %v423
    %v438 = vpack.c.b16 %v426, %v425
    %v439 = vpack.c.b16 %v428, %v427
    %v440 = vpack.c.b16 %v430, %v429
    %v441 = vpack.c.b16 %v432, %v431
    %v442 = vpack.c.b16 %v434, %v433
    %451 = vmatpush.bf16.msra.mxu0 %v442
    %452 = vmatpush.bf16.msra.mxu0 %v441
    %453 = vmatpush.bf16.msra.mxu0 %v440
    %454 = vmatpush.bf16.msra.mxu0 %v439
    %455 = vmatpush.bf16.msra.mxu0 %v438
    %456 = vmatpush.bf16.msra.mxu0 %v437
    %457 = vmatpush.bf16.msra.mxu0 %v436
    %458 = vmatpush.bf16.msra.mxu0 %v435
    %459 = vmatmul.bf16.gmra.mxu0 %v382
    %v460 = vpop.f32.mrf.mxu0
    %v461 = vadd.f32 %v401, %v460
    %v462 = vpop.f32.mrf.mxu0
    %463 = vdwg.mxu0
    %v464 = vpack.c.bf16 %v461, %v461
    %465 = vst [vmem:[#allocation11] sm:$0xf] %v464
    // Predicated region
    $region58: #{tpu_custom_call.1} parent=1 // pred_check
      _
    $region59: #{tpu_custom_call.1} parent=1 // pred_check_branch
      %467 = sbr.rel (0) target = $region61
    $region60: #{tpu_custom_call.1} parent=1 // pred_region
      %469 = vsyncadd [#allocation4], 0
      %s471 = sshll.u32 [#allocation11], 4
      %s472 = int_to_ptr.vmem [resolvable:$true] %s471
      %s473 = sshll.u32 %s9, 4
      %s474 = int_to_ptr.hbm [resolvable:$true] %s473
      %476 = dma.vmem_to_hbm [thread:$0]  %s472, 64, %s474, [#allocation4]
    $region61: #{tpu_custom_call.1} parent=1 // pred_fallthru
      _
    // Predicated region
    $region62: #{tpu_custom_call.1} parent=1 // pred_check
      _
    $region63: #{tpu_custom_call.1} parent=1 // pred_check_branch
      %478 = sbr.rel (0) target = $region65
    $region64: #{tpu_custom_call.1} parent=1 // pred_region
      %480 = dma.done [#allocation4], 64
    $region65: #{tpu_custom_call.1} parent=1 // pred_fallthru
      _
    %481 = vsyncpa [#allocation3], 1
    %482 = vsyncpa [#allocation6], 1
    %483 = vsyncpa [#allocation9], 1
    %484 = vsyncpa [#allocation4], 1

// kernel: tpu_custom_call.1
$region0: #{tpu_custom_call.1}
  #allocation0 [shape = 'u32[]', space=smem, size = 0x4, offset = 0x4, fixed_abs, tag = 'smem constant byte address 0x4 - core index']
  #allocation1 [shape = 'u32[72,128]{1,0:T(1,128)}', space=vmem, size = 0x9000, scoped, tag = 'internal scratch']
  %s0 = inlined_call_operand.hbm [shape: bf16[8,128], index: 0, kind: input, shape index: {}]
  %s1 = inlined_call_operand.hbm [shape: bf16[128,128], index: 1, kind: input, shape index: {}]
  %s2 = inlined_call_operand.hbm [shape: bf16[128,128], index: 2, kind: input, shape index: {}]
  %s3 = inlined_call_operand.hbm [shape: bf16[128,128], index: 3, kind: input, shape index: {}]
  %s4 = inlined_call_operand.hbm [shape: bf16[128,128], index: 4, kind: input, shape index: {}]
  %s5 = inlined_call_operand.vmem [shape: f32[1,128], index: 5, kind: input, shape index: {}]
  %s6 = inlined_call_operand.vmem [shape: f32[1,128], index: 6, kind: input, shape index: {}]
  %s7 = inlined_call_operand.vmem [shape: f32[1,128], index: 7, kind: input, shape index: {}]
  %s8 = inlined_call_operand.vmem [shape: f32[1,128], index: 8, kind: input, shape index: {}]
  %s9 = inlined_call_operand.hbm [shape: bf16[8,128], index: 9, kind: output, shape index: {}]
  %s10 = sld [smem:[#allocation0]]
  $region66: #{tpu_custom_call.1} parent=0
    _
  %s12 = ssub.s32 1, %s10
  %s13 = scalar_select 0, %s12, %s10
  $region1: #{tpu_custom_call.1} parent=0
    #allocation2 [shape = 'u8[2048]{0}', space=vmem, size = 0x800, scoped, tag = 'input window, operand 0, single buffered']
    #allocation3 [shape = 's32[1]{0}', space=sflag, size = 0x4, scoped, tag = 'scoped memory for tpu_custom_call.1']
    #allocation4 [shape = 's32[1]{0}', space=sflag, size = 0x4, scoped, tag = 'scoped memory for tpu_custom_call.1']
    #allocation5 [shape = 'u8[32768]{0}', space=vmem, size = 0x8000, scoped, tag = 'input window, operand 1, single buffered']
    #allocation6 [shape = 's32[1]{0}', space=sflag, size = 0x4, scoped, tag = 'scoped memory for tpu_custom_call.1']
    #allocation7 [shape = 'u8[32768]{0}', space=vmem, size = 0x8000, scoped, tag = 'input window, operand 2, single buffered']
    #allocation8 [shape = 'u8[32768]{0}', space=vmem, size = 0x8000, scoped, tag = 'input window, operand 3, single buffered']
    #allocation9 [shape = 's32[1]{0}', space=sflag, size = 0x4, scoped, tag = 'scoped memory for tpu_custom_call.1']
    #allocation10 [shape = 'u8[32768]{0}', space=vmem, size = 0x8000, scoped, tag = 'input window, operand 4, single buffered']
    #allocation11 [shape = 'u8[2048]{0}', space=vmem, size = 0x800, scoped, tag = 'output window, operand 0, single buffered']
    %14 = vsyncpa [#allocation3], 0
    %15 = vsyncpa [#allocation6], 0
    %16 = vsyncpa [#allocation9], 0
    %17 = vsyncpa [#allocation4], 0
    // Predicated region
    $region2: #{tpu_custom_call.1} parent=1 // pred_check
      _
    $region3: #{tpu_custom_call.1} parent=1 // pred_check_branch
      %19 = sbr.rel (0) target = $region5
    $region4: #{tpu_custom_call.1} parent=1 // pred_region
      %21 = vsyncadd [#allocation3], 0
      %s23 = sshll.u32 %s0, 4
      %s24 = int_to_ptr.hbm [resolvable:$true] %s23
      %s25 = sshll.u32 [#allocation2], 4
      %s26 = int_to_ptr.vmem [resolvable:$true] %s25
      %28 = dma.hbm_to_vmem [thread:$0]  %s24, 64, %s26, [#allocation3]
    $region5: #{tpu_custom_call.1} parent=1 // pred_fallthru
      _
    // Predicated region
    $region6: #{tpu_custom_call.1} parent=1 // pred_check
      _
    $region7: #{tpu_custom_call.1} parent=1 // pred_check_branch
      %30 = sbr.rel (0) target = $region9
    $region8: #{tpu_custom_call.1} parent=1 // pred_region
      %32 = vsyncadd [#allocation6], 0
      %s33 = sshll.u32 %s1, 4
      %s34 = int_to_ptr.hbm [resolvable:$true] %s33
      %s35 = sshll.u32 [#allocation5], 4
      %s36 = int_to_ptr.vmem [resolvable:$true] %s35
      %41 = dma.hbm_to_vmem [thread:$0]  %s34, 1024, %s36, [#allocation6], 64, 64, 4
    $region9: #{tpu_custom_call.1} parent=1 // pred_fallthru
      _
    // Predicated region
    $region10: #{tpu_custom_call.1} parent=1 // pred_check
      _
    $region11: #{tpu_custom_call.1} parent=1 // pred_check_branch
      %43 = sbr.rel (0) target = $region13
    $region12: #{tpu_custom_call.1} parent=1 // pred_region
      %45 = vsyncadd [#allocation6], 0
      %s46 = sshll.u32 %s2, 4
      %s47 = int_to_ptr.hbm [resolvable:$true] %s46
      %s48 = sshll.u32 [#allocation7], 4
      %s49 = int_to_ptr.vmem [resolvable:$true] %s48
      %54 = dma.hbm_to_vmem [thread:$0]  %s47, 1024, %s49, [#allocation6], 64, 64, 4
    $region13: #{tpu_custom_call.1} parent=1 // pred_fallthru
      _
    // Predicated region
    $region14: #{tpu_custom_call.1} parent=1 // pred_check
      _
    $region15: #{tpu_custom_call.1} parent=1 // pred_check_branch
      %56 = sbr.rel (0) target = $region17
    $region16: #{tpu_custom_call.1} parent=1 // pred_region
      %58 = vsyncadd [#allocation9], 0
      %s59 = sshll.u32 %s3, 4
      %s60 = int_to_ptr.hbm [resolvable:$true] %s59
      %s61 = sshll.u32 [#allocation8], 4
      %s62 = int_to_ptr.vmem [resolvable:$true] %s61
      %67 = dma.hbm_to_vmem [thread:$0]  %s60, 1024, %s62, [#allocation9], 64, 64, 4
    $region17: #{tpu_custom_call.1} parent=1 // pred_fallthru
      _
    // Predicated region
    $region18: #{tpu_custom_call.1} parent=1 // pred_check
      _
    $region19: #{tpu_custom_call.1} parent=1 // pred_check_branch
      %69 = sbr.rel (0) target = $region21
    $region20: #{tpu_custom_call.1} parent=1 // pred_region
      %71 = vsyncadd [#allocation9], 0
      %s72 = sshll.u32 %s4, 4
      %s73 = int_to_ptr.hbm [resolvable:$true] %s72
      %s74 = sshll.u32 [#allocation10], 4
      %s75 = int_to_ptr.vmem [resolvable:$true] %s74
      %80 = dma.hbm_to_vmem [thread:$0]  %s73, 1024, %s75, [#allocation9], 64, 64, 4
    $region21: #{tpu_custom_call.1} parent=1 // pred_fallthru
      _
    // Predicated region
    $region22: #{tpu_custom_call.1} parent=1 // pred_check
      _
    $region23: #{tpu_custom_call.1} parent=1 // pred_check_branch
      %82 = sbr.rel (0) target = $region25
    $region24: #{tpu_custom_call.1} parent=1 // pred_region
      _
    $region25: #{tpu_custom_call.1} parent=1 // pred_fallthru
      _
    // Predicated region
    $region26: #{tpu_custom_call.1} parent=1 // pred_check
      _
    $region27: #{tpu_custom_call.1} parent=1 // pred_check_branch
      %84 = sbr.rel (0) target = $region29
    $region28: #{tpu_custom_call.1} parent=1 // pred_region
      _
    $region29: #{tpu_custom_call.1} parent=1 // pred_fallthru
      _
    // Predicated region
    $region30: #{tpu_custom_call.1} parent=1 // pred_check
      _
    $region31: #{tpu_custom_call.1} parent=1 // pred_check_branch
      %86 = sbr.rel (0) target = $region33
    $region32: #{tpu_custom_call.1} parent=1 // pred_region
      _
    $region33: #{tpu_custom_call.1} parent=1 // pred_fallthru
      _
    // Predicated region
    $region34: #{tpu_custom_call.1} parent=1 // pred_check
      _
    $region35: #{tpu_custom_call.1} parent=1 // pred_check_branch
      %88 = sbr.rel (0) target = $region37
    $region36: #{tpu_custom_call.1} parent=1 // pred_region
      _
    $region37: #{tpu_custom_call.1} parent=1 // pred_fallthru
      _
    // Predicated region
    $region38: #{tpu_custom_call.1} parent=1 // pred_check
      _
    $region39: #{tpu_custom_call.1} parent=1 // pred_check_branch
      %90 = sbr.rel (0) target = $region41
    $region40: #{tpu_custom_call.1} parent=1 // pred_region
      %92 = dma.done [#allocation3], 64
    $region41: #{tpu_custom_call.1} parent=1 // pred_fallthru
      _
    // Predicated region
    $region42: #{tpu_custom_call.1} parent=1 // pred_check
      _
    $region43: #{tpu_custom_call.1} parent=1 // pred_check_branch
      %94 = sbr.rel (0) target = $region45
    $region44: #{tpu_custom_call.1} parent=1 // pred_region
      %96 = dma.done [#allocation6], 1024
    $region45: #{tpu_custom_call.1} parent=1 // pred_fallthru
      _
    // Predicated region
    $region46: #{tpu_custom_call.1} parent=1 // pred_check
      _
    $region47: #{tpu_custom_call.1} parent=1 // pred_check_branch
      %98 = sbr.rel (0) target = $region49
    $region48: #{tpu_custom_call.1} parent=1 // pred_region
      %100 = dma.done [#allocation6], 1024
    $region49: #{tpu_custom_call.1} parent=1 // pred_fallthru
      _
    // Predicated region
    $region50: #{tpu_custom_call.1} parent=1 // pred_check
      _
    $region51: #{tpu_custom_call.1} parent=1 // pred_check_branch
      %102 = sbr.rel (0) target = $region53
    $region52: #{tpu_custom_call.1} parent=1 // pred_region
      %104 = dma.done [#allocation9], 1024
    $region53: #{tpu_custom_call.1} parent=1 // pred_fallthru
      _
    // Predicated region
    $region54: #{tpu_custom_call.1} parent=1 // pred_check
      _
    $region55: #{tpu_custom_call.1} parent=1 // pred_check_branch
      %106 = sbr.rel (0) target = $region57
    $region56: #{tpu_custom_call.1} parent=1 // pred_region
      %108 = dma.done [#allocation9], 1024
    $region57: #{tpu_custom_call.1} parent=1 // pred_fallthru
      _
    %v109 = vld [vmem:[#allocation2] sm:$0xf]
    %v110 = vld [vmem:[#allocation5] sm:$0xf]
    %v111 = vld [vmem:[#allocation5 + $0x4] sm:$0xf]
    %v112 = vld [vmem:[#allocation5 + $0x8] sm:$0xf]
    %v113 = vld [vmem:[#allocation5 + $0xc] sm:$0xf]
    %v114 = vld [vmem:[#allocation5 + $0x10] sm:$0xf]
    %v115 = vld [vmem:[#allocation5 + $0x14] sm:$0xf]
    %v116 = vld [vmem:[#allocation5 + $0x18] sm:$0xf]
    %v117 = vld [vmem:[#allocation5 + $0x1c] sm:$0xf]
    %v118 = vld [vmem:[#allocation5 + $0x20] sm:$0xf]
    %v119 = vld [vmem:[#allocation5 + $0x24] sm:$0xf]
    %v120 = vld [vmem:[#allocation5 + $0x28] sm:$0xf]
    %v121 = vld [vmem:[#allocation5 + $0x2c] sm:$0xf]
    %v122 = vld [vmem:[#allocation5 + $0x30] sm:$0xf]
    %v123 = vld [vmem:[#allocation5 + $0x34] sm:$0xf]
    %v124 = vld [vmem:[#allocation5 + $0x38] sm:$0xf]
    %v125 = vld [vmem:[#allocation5 + $0x3c] sm:$0xf]
    %v142 = vunpack.c.l.b16 %v110
    %v143 = vunpack.c.l.b16 %v111
    %v144 = vunpack.c.l.b16 %v112
    %v145 = vunpack.c.l.b16 %v113
    %v146 = vunpack.c.l.b16 %v114
    %v147 = vunpack.c.l.b16 %v115
    %v148 = vunpack.c.l.b16 %v116
    %v149 = vunpack.c.l.b16 %v117
    %v150 = vunpack.c.l.b16 %v118
    %v151 = vunpack.c.l.b16 %v119
    %v152 = vunpack.c.l.b16 %v120
    %v153 = vunpack.c.l.b16 %v121
    %v154 = vunpack.c.l.b16 %v122
    %v155 = vunpack.c.l.b16 %v123
    %v156 = vunpack.c.l.b16 %v124
    %v157 = vunpack.c.l.b16 %v125
    %v158 = vpack.c.b16 %v143, %v142
    %v159 = vpack.c.b16 %v145, %v144
    %v160 = vpack.c.b16 %v147, %v146
    %v161 = vpack.c.b16 %v149, %v148
    %v162 = vpack.c.b16 %v151, %v150
    %v163 = vpack.c.b16 %v153, %v152
    %v164 = vpack.c.b16 %v155, %v154
    %v165 = vpack.c.b16 %v157, %v156
    %174 = vmatpush.bf16.msra.mxu0 %v165
    %175 = vmatpush.bf16.msra.mxu0 %v164
    %176 = vmatpush.bf16.msra.mxu0 %v163
    %177 = vmatpush.bf16.msra.mxu0 %v162
    %178 = vmatpush.bf16.msra.mxu0 %v161
    %179 = vmatpush.bf16.msra.mxu0 %v160
    %180 = vmatpush.bf16.msra.mxu0 %v159
    %181 = vmatpush.bf16.msra.mxu0 %v158
    %182 = vmatmul.bf16.gmra.mxu0 %v109
    %v183 = vpop.f32.mrf.mxu0
    %v184 = vadd.f32 0.0, %v183
    %v185 = vpop.f32.mrf.mxu0
    %186 = vdwg.mxu0
    %v187 = vpack.c.bf16 %v184, %v184
    %v188 = vld [vmem:[%s5] sm:$0x1]
    %v189 = vpack.c.bf16 %v188, %v188
    %v191 = vpack.i.b16 %v189, %v189
    %v193 = vperm.slane %v191, 0
    %v194 = vunpack.c.l.bf16 %v187
    %v195 = vunpack.c.l.bf16 %v193
    %v196 = vadd.f32 %v194, %v195
    %v197 = vpack.c.bf16 %v196, %v196
    %v198 = vunpack.c.l.bf16 %v197
    %v199 = vtanh.pop %v198
    %v200 = vpack.c.bf16 %v199, %v199
    %v201 = vld [vmem:[#allocation7] sm:$0xf]
    %v202 = vld [vmem:[#allocation7 + $0x4] sm:$0xf]
    %v203 = vld [vmem:[#allocation7 + $0x8] sm:$0xf]
    %v204 = vld [vmem:[#allocation7 + $0xc] sm:$0xf]
    %v205 = vld [vmem:[#allocation7 + $0x10] sm:$0xf]
    %v206 = vld [vmem:[#allocation7 + $0x14] sm:$0xf]
    %v207 = vld [vmem:[#allocation7 + $0x18] sm:$0xf]
    %v208 = vld [vmem:[#allocation7 + $0x1c] sm:$0xf]
    %v209 = vld [vmem:[#allocation7 + $0x20] sm:$0xf]
    %v210 = vld [vmem:[#allocation7 + $0x24] sm:$0xf]
    %v211 = vld [vmem:[#allocation7 + $0x28] sm:$0xf]
    %v212 = vld [vmem:[#allocation7 + $0x2c] sm:$0xf]
    %v213 = vld [vmem:[#allocation7 + $0x30] sm:$0xf]
    %v214 = vld [vmem:[#allocation7 + $0x34] sm:$0xf]
    %v215 = vld [vmem:[#allocation7 + $0x38] sm:$0xf]
    %v216 = vld [vmem:[#allocation7 + $0x3c] sm:$0xf]
    %v233 = vunpack.c.l.b16 %v201
    %v234 = vunpack.c.l.b16 %v202
    %v235 = vunpack.c.l.b16 %v203
    %v236 = vunpack.c.l.b16 %v204
    %v237 = vunpack.c.l.b16 %v205
    %v238 = vunpack.c.l.b16 %v206
    %v239 = vunpack.c.l.b16 %v207
    %v240 = vunpack.c.l.b16 %v208
    %v241 = vunpack.c.l.b16 %v209
    %v242 = vunpack.c.l.b16 %v210
    %v243 = vunpack.c.l.b16 %v211
    %v244 = vunpack.c.l.b16 %v212
    %v245 = vunpack.c.l.b16 %v213
    %v246 = vunpack.c.l.b16 %v214
    %v247 = vunpack.c.l.b16 %v215
    %v248 = vunpack.c.l.b16 %v216
    %v249 = vpack.c.b16 %v234, %v233
    %v250 = vpack.c.b16 %v236, %v235
    %v251 = vpack.c.b16 %v238, %v237
    %v252 = vpack.c.b16 %v240, %v239
    %v253 = vpack.c.b16 %v242, %v241
    %v254 = vpack.c.b16 %v244, %v243
    %v255 = vpack.c.b16 %v246, %v245
    %v256 = vpack.c.b16 %v248, %v247
    %265 = vmatpush.bf16.msra.mxu0 %v256
    %266 = vmatpush.bf16.msra.mxu0 %v255
    %267 = vmatpush.bf16.msra.mxu0 %v254
    %268 = vmatpush.bf16.msra.mxu0 %v253
    %269 = vmatpush.bf16.msra.mxu0 %v252
    %270 = vmatpush.bf16.msra.mxu0 %v251
    %271 = vmatpush.bf16.msra.mxu0 %v250
    %272 = vmatpush.bf16.msra.mxu0 %v249
    %273 = vmatmul.bf16.gmra.mxu0 %v200
    %v274 = vpop.f32.mrf.mxu0
    %v275 = vadd.f32 0.0, %v274
    %v276 = vpop.f32.mrf.mxu0
    %277 = vdwg.mxu0
    %v278 = vpack.c.bf16 %v275, %v275
    %v279 = vld [vmem:[%s6] sm:$0x1]
    %v280 = vpack.c.bf16 %v279, %v279
    %v282 = vpack.i.b16 %v280, %v280
    %v284 = vperm.slane %v282, 0
    %v285 = vunpack.c.l.bf16 %v278
    %v286 = vunpack.c.l.bf16 %v284
    %v287 = vadd.f32 %v285, %v286
    %v288 = vpack.c.bf16 %v287, %v287
    %v289 = vunpack.c.l.bf16 %v288
    %v290 = vtanh.pop %v289
    %v291 = vpack.c.bf16 %v290, %v290
    %v292 = vld [vmem:[#allocation8] sm:$0xf]
    %v293 = vld [vmem:[#allocation8 + $0x4] sm:$0xf]
    %v294 = vld [vmem:[#allocation8 + $0x8] sm:$0xf]
    %v295 = vld [vmem:[#allocation8 + $0xc] sm:$0xf]
    %v296 = vld [vmem:[#allocation8 + $0x10] sm:$0xf]
    %v297 = vld [vmem:[#allocation8 + $0x14] sm:$0xf]
    %v298 = vld [vmem:[#allocation8 + $0x18] sm:$0xf]
    %v299 = vld [vmem:[#allocation8 + $0x1c] sm:$0xf]
    %v300 = vld [vmem:[#allocation8 + $0x20] sm:$0xf]
    %v301 = vld [vmem:[#allocation8 + $0x24] sm:$0xf]
    %v302 = vld [vmem:[#allocation8 + $0x28] sm:$0xf]
    %v303 = vld [vmem:[#allocation8 + $0x2c] sm:$0xf]
    %v304 = vld [vmem:[#allocation8 + $0x30] sm:$0xf]
    %v305 = vld [vmem:[#allocation8 + $0x34] sm:$0xf]
    %v306 = vld [vmem:[#allocation8 + $0x38] sm:$0xf]
    %v307 = vld [vmem:[#allocation8 + $0x3c] sm:$0xf]
    %v324 = vunpack.c.l.b16 %v292
    %v325 = vunpack.c.l.b16 %v293
    %v326 = vunpack.c.l.b16 %v294
    %v327 = vunpack.c.l.b16 %v295
    %v328 = vunpack.c.l.b16 %v296
    %v329 = vunpack.c.l.b16 %v297
    %v330 = vunpack.c.l.b16 %v298
    %v331 = vunpack.c.l.b16 %v299
    %v332 = vunpack.c.l.b16 %v300
    %v333 = vunpack.c.l.b16 %v301
    %v334 = vunpack.c.l.b16 %v302
    %v335 = vunpack.c.l.b16 %v303
    %v336 = vunpack.c.l.b16 %v304
    %v337 = vunpack.c.l.b16 %v305
    %v338 = vunpack.c.l.b16 %v306
    %v339 = vunpack.c.l.b16 %v307
    %v340 = vpack.c.b16 %v325, %v324
    %v341 = vpack.c.b16 %v327, %v326
    %v342 = vpack.c.b16 %v329, %v328
    %v343 = vpack.c.b16 %v331, %v330
    %v344 = vpack.c.b16 %v333, %v332
    %v345 = vpack.c.b16 %v335, %v334
    %v346 = vpack.c.b16 %v337, %v336
    %v347 = vpack.c.b16 %v339, %v338
    %356 = vmatpush.bf16.msra.mxu0 %v347
    %357 = vmatpush.bf16.msra.mxu0 %v346
    %358 = vmatpush.bf16.msra.mxu0 %v345
    %359 = vmatpush.bf16.msra.mxu0 %v344
    %360 = vmatpush.bf16.msra.mxu0 %v343
    %361 = vmatpush.bf16.msra.mxu0 %v342
    %362 = vmatpush.bf16.msra.mxu0 %v341
    %363 = vmatpush.bf16.msra.mxu0 %v340
    %364 = vmatmul.bf16.gmra.mxu0 %v291
    %v365 = vpop.f32.mrf.mxu0
    %v366 = vadd.f32 0.0, %v365
    %v367 = vpop.f32.mrf.mxu0
    %368 = vdwg.mxu0
    %v369 = vpack.c.bf16 %v366, %v366
    %v370 = vld [vmem:[%s7] sm:$0x1]
    %v371 = vpack.c.bf16 %v370, %v370
    %v373 = vpack.i.b16 %v371, %v371
    %v375 = vperm.slane %v373, 0
    %v376 = vunpack.c.l.bf16 %v369
    %v377 = vunpack.c.l.bf16 %v375
    %v378 = vadd.f32 %v376, %v377
    %v379 = vpack.c.bf16 %v378, %v378
    %v380 = vunpack.c.l.bf16 %v379
    %v381 = vtanh.pop %v380
    %v382 = vpack.c.bf16 %v381, %v381
    %v383 = vld [vmem:[#allocation10] sm:$0xf]
    %v384 = vld [vmem:[#allocation10 + $0x4] sm:$0xf]
    %v385 = vld [vmem:[#allocation10 + $0x8] sm:$0xf]
    %v386 = vld [vmem:[#allocation10 + $0xc] sm:$0xf]
    %v387 = vld [vmem:[#allocation10 + $0x10] sm:$0xf]
    %v388 = vld [vmem:[#allocation10 + $0x14] sm:$0xf]
    %v389 = vld [vmem:[#allocation10 + $0x18] sm:$0xf]
    %v390 = vld [vmem:[#allocation10 + $0x1c] sm:$0xf]
    %v391 = vld [vmem:[#allocation10 + $0x20] sm:$0xf]
    %v392 = vld [vmem:[#allocation10 + $0x24] sm:$0xf]
    %v393 = vld [vmem:[#allocation10 + $0x28] sm:$0xf]
    %v394 = vld [vmem:[#allocation10 + $0x2c] sm:$0xf]
    %v395 = vld [vmem:[#allocation10 + $0x30] sm:$0xf]
    %v396 = vld [vmem:[#allocation10 + $0x34] sm:$0xf]
    %v397 = vld [vmem:[#allocation10 + $0x38] sm:$0xf]
    %v398 = vld [vmem:[#allocation10 + $0x3c] sm:$0xf]
    %v399 = vld [vmem:[%s8] sm:$0x1]
    %v401 = vperm.slane %v399, 0
    %v419 = vunpack.c.l.b16 %v383
    %v420 = vunpack.c.l.b16 %v384
    %v421 = vunpack.c.l.b16 %v385
    %v422 = vunpack.c.l.b16 %v386
    %v423 = vunpack.c.l.b16 %v387
    %v424 = vunpack.c.l.b16 %v388
    %v425 = vunpack.c.l.b16 %v389
    %v426 = vunpack.c.l.b16 %v390
    %v427 = vunpack.c.l.b16 %v391
    %v428 = vunpack.c.l.b16 %v392
    %v429 = vunpack.c.l.b16 %v393
    %v430 = vunpack.c.l.b16 %v394
    %v431 = vunpack.c.l.b16 %v395
    %v432 = vunpack.c.l.b16 %v396
    %v433 = vunpack.c.l.b16 %v397
    %v434 = vunpack.c.l.b16 %v398
    %v435 = vpack.c.b16 %v420, %v419
    %v436 = vpack.c.b16 %v422, %v421
    %v437 = vpack.c.b16 %v424, %v423
    %v438 = vpack.c.b16 %v426, %v425
    %v439 = vpack.c.b16 %v428, %v427
    %v440 = vpack.c.b16 %v430, %v429
    %v441 = vpack.c.b16 %v432, %v431
    %v442 = vpack.c.b16 %v434, %v433
    %451 = vmatpush.bf16.msra.mxu0 %v442
    %452 = vmatpush.bf16.msra.mxu0 %v441
    %453 = vmatpush.bf16.msra.mxu0 %v440
    %454 = vmatpush.bf16.msra.mxu0 %v439
    %455 = vmatpush.bf16.msra.mxu0 %v438
    %456 = vmatpush.bf16.msra.mxu0 %v437
    %457 = vmatpush.bf16.msra.mxu0 %v436
    %458 = vmatpush.bf16.msra.mxu0 %v435
    %459 = vmatmul.bf16.gmra.mxu0 %v382
    %v460 = vpop.f32.mrf.mxu0
    %v461 = vadd.f32 %v401, %v460
    %v462 = vpop.f32.mrf.mxu0
    %463 = vdwg.mxu0
    %v464 = vpack.c.bf16 %v461, %v461
    %465 = vst [vmem:[#allocation11] sm:$0xf] %v464
    // Predicated region
    $region58: #{tpu_custom_call.1} parent=1 // pred_check
      _
    $region59: #{tpu_custom_call.1} parent=1 // pred_check_branch
      %467 = sbr.rel (0) target = $region61
    $region60: #{tpu_custom_call.1} parent=1 // pred_region
      %469 = vsyncadd [#allocation4], 0
      %s471 = sshll.u32 [#allocation11], 4
      %s472 = int_to_ptr.vmem [resolvable:$true] %s471
      %s473 = sshll.u32 %s9, 4
      %s474 = int_to_ptr.hbm [resolvable:$true] %s473
      %476 = dma.vmem_to_hbm [thread:$0]  %s472, 64, %s474, [#allocation4]
    $region61: #{tpu_custom_call.1} parent=1 // pred_fallthru
      _
    // Predicated region
    $region62: #{tpu_custom_call.1} parent=1 // pred_check
      _
    $region63: #{tpu_custom_call.1} parent=1 // pred_check_branch
      %478 = sbr.rel (0) target = $region65
    $region64: #{tpu_custom_call.1} parent=1 // pred_region
      %480 = dma.done [#allocation4], 64
    $region65: #{tpu_custom_call.1} parent=1 // pred_fallthru
      _
    %481 = vsyncpa [#allocation3], 1
    %482 = vsyncpa [#allocation6], 1
    %483 = vsyncpa [#allocation9], 1
    %484 = vsyncpa [#allocation4], 1

</llo_original>
